<compile_context>
chip_gen: v5e
topology: v5e:2x2
jax: 0.10.0
libtpu: 0.0.40
codegen_flags: <defaults>
</compile_context>

<pallas_src>
import functools
import math
from typing import NamedTuple

import numpy as np
import jax
import jax.numpy as jnp
from jax.experimental import pallas as pl
from jax.experimental.pallas import tpu as pltpu


def _round_up(a, b):
    return ((a + b - 1) // b) * b


# ----------------------------- Pallas kernel --------------------------------

def lsq_linear_kernel(inv_sx_ref, sxsw_ref, x_ref, wq_ref, b_ref, o_ref, qx_ref,
                      *, x_qmin, x_qmax, acc_dtype):
    # inv_sx_ref : SMEM (1,) f32    1 / input LSQ step size
    # sxsw_ref   : SMEM (1,) f32    sx * sw combined dequant scale
    # x_ref      : (tm, K)  float   input row tile (block revisited across j)
    # wq_ref     : (K, tn)  levels  pre-quantized weight levels (bf16 or int8)
    # b_ref      : (1, tn)  f32     bias tile (zero padded)
    # o_ref      : (tm, tn) f32     output tile
    # qx_ref     : (tm, K)  levels  VMEM scratch: cached activation levels
    #
    # Quantize the activations to integer levels ONCE per row tile.  The N axis
    # (j) is the innermost, in-order ("arbitrary") grid axis, so j == 0 runs
    # first for every i; the cached levels are then reused for every N tile,
    # keeping the MXU -- not the VPU round/clip -- the saturating unit.
    @pl.when(pl.program_id(1) == 0)
    def _():
        q = jnp.clip(jnp.round(x_ref[...].astype(jnp.float32) * inv_sx_ref[0]),
                     x_qmin, x_qmax)
        qx_ref[...] = q.astype(qx_ref.dtype)

    acc = jax.lax.dot_general(
        qx_ref[...], wq_ref[...],
        dimension_numbers=(((1,), (0,)), ((), ())),     # (tm, K) x (K, tn)
        preferred_element_type=acc_dtype,               # f32 (bf16 levels) / i32 (int8 levels)
    )
    o_ref[...] = acc.astype(jnp.float32) * sxsw_ref[0] + b_ref[...]


# ------------------------- one-time weight-side prep -------------------------

class LSQLinearParams(NamedTuple):
    wq_t: jax.Array      # (K, Np)  integer weight levels, bf16 or int8
    b2d: jax.Array       # (1, Np)  f32 bias, zero padded
    w_scale: jax.Array   # ()       f32 weight LSQ step size
    n_out: int
    k_in: int
    tn: int              # N tile size actually used (multiple of 128, divides Np)


def _auto_levels_dtype(k_in, n_padded, w_qmin, w_qmax):
    """int8 levels on chips with an integer MXU (v5e/v6e) for large, 32-aligned
    layers; bf16 (exact for |level| <= 256) elsewhere, incl. v7x (no int MXU)."""
    try:
        kind = jax.devices()[0].device_kind.lower()
    except Exception:
        return np.dtype(jnp.bfloat16)
    has_int_mxu = any(t in kind for t in
                      ("v5 lite", "v5e", "v5litepod", "v6 lite", "v6e"))
    fits_i8 = (w_qmin >= -128) and (w_qmax <= 127)
    aligned = (k_in % 32 == 0)                     # i8 sublane tile alignment
    big = (k_in * n_padded * 2) >= (4 << 20)       # resident weight big enough to matter
    use_i8 = has_int_mxu and fits_i8 and aligned and big
    return np.dtype(jnp.int8) if use_i8 else np.dtype(jnp.bfloat16)


def prepare_lsq_linear(weight, bias, w_scale, *, w_qmin=-128, w_qmax=127,
                       tn=512, lane=128, levels_dtype=None):
    """One-time (per weight update) preparation, hoisted out of the forward:
    quantize W to integer levels, transpose to the MXU-native (K, N) layout,
    zero-pad N so it is a multiple of a lane-dense N tile, cast to the MXU
    level dtype and pad the bias to match.  fq(0) = 0, so padding is inert."""
    n_out, k_in = weight.shape
    sw = jnp.asarray(w_scale, jnp.float32).reshape(())

    # Balanced N tiling: Np = nj * tn_eff, tn_eff a multiple of the 128 lanes.
    np0 = _round_up(n_out, lane)
    nj = pl.cdiv(np0, tn)
    tn_eff = _round_up(pl.cdiv(np0, nj), lane)
    n_pad = nj * tn_eff

    if levels_dtype is None:
        levels_dtype = _auto_levels_dtype(k_in, n_pad, w_qmin, w_qmax)
    levels_dtype = np.dtype(levels_dtype)
    if levels_dtype == np.dtype(jnp.int8):
        assert w_qmin >= -128 and w_qmax <= 127, "int8 levels need an 8-bit range"
    else:
        assert max(abs(w_qmin), abs(w_qmax)) <= 256, \
            "bf16 levels are exact only for |q| <= 256"

    q_w = jnp.clip(jnp.round(weight.astype(jnp.float32) / sw),
                   float(w_qmin), float(w_qmax))
    wq_t = jnp.pad(q_w.T, ((0, 0), (0, n_pad - n_out))).astype(levels_dtype)

    b = bias if bias is not None else jnp.zeros((n_out,), jnp.float32)
    b2d = jnp.pad(jnp.asarray(b, jnp.float32).reshape(1, n_out),
                  ((0, 0), (0, n_pad - n_out)))

    return LSQLinearParams(wq_t=wq_t, b2d=b2d, w_scale=sw,
                           n_out=n_out, k_in=k_in, tn=tn_eff)


# ----------------------------- forward wrapper --------------------------------

def lsq_linear(x, params: LSQLinearParams, x_scale, *,
               x_qmin=-128, x_qmax=127, tm=256):
    """out = fq(x) @ fq(W).T + bias  with per-tensor symmetric fake-quantization."""
    *lead, K = x.shape
    assert K == params.k_in
    M = int(math.prod(lead)) if lead else 1

    wq_t, b2d = params.wq_t, params.b2d
    level_dtype = np.dtype(wq_t.dtype)
    Kp, Np = wq_t.shape
    tn_eff = params.tn
    nj = Np // tn_eff

    if level_dtype == np.dtype(jnp.int8):
        assert x_qmin >= -128 and x_qmax <= 127
        acc_dtype = jnp.int32
        row_mult = 32                              # i8 sublane tile
    else:
        assert max(abs(x_qmin), abs(x_qmax)) <= 256  # bf16-exact level range
        acc_dtype = jnp.float32
        row_mult = 8

    # Row tiling: up to `tm` rows, rebalanced so a trailing tile is never mostly
    # padding (e.g. M=260 -> 2x136 instead of 256+4-with-252-pad).  No K padding:
    # full-K blocks satisfy the block-shape rule and avoid materializing a padded
    # activation copy in HBM.
    ni = pl.cdiv(max(M, 1), tm)
    tm_eff = _round_up(pl.cdiv(max(M, 1), ni), row_mult)
    Mp = ni * tm_eff

    x2d = x.reshape(M, K)
    if Mp != M:
        x2d = jnp.pad(x2d, ((0, Mp - M), (0, 0)))

    sx = jnp.asarray(x_scale, jnp.float32).reshape(())
    inv_sx = (1.0 / sx).reshape(1)
    sxsw = (sx * params.w_scale).reshape(1)

    # Constant blocks (single N tile) buy nothing from double buffering.
    if nj == 1:
        w_spec = pl.BlockSpec((Kp, tn_eff), lambda i, j: (0, j),
                              pipeline_mode=pl.Buffered(1))
        b_spec = pl.BlockSpec((1, tn_eff), lambda i, j: (0, j),
                              pipeline_mode=pl.Buffered(1))
        w_bufs = 1
    else:
        w_spec = pl.BlockSpec((Kp, tn_eff), lambda i, j: (0, j))
        b_spec = pl.BlockSpec((1, tn_eff), lambda i, j: (0, j))
        w_bufs = 2

    x_bytes = x2d.dtype.itemsize
    lvl_bytes = level_dtype.itemsize
    vmem_need = (2 * tm_eff * K * x_bytes             # x tiles (double buffered)
                 + w_bufs * Kp * tn_eff * lvl_bytes   # weight tiles
                 + w_bufs * tn_eff * 4                # bias tiles
                 + 2 * tm_eff * tn_eff * 4            # output tiles
                 + tm_eff * K * lvl_bytes)            # qx level scratch
    vmem_limit = int(min(max(2 * vmem_need, 32 << 20), 64 << 20))

    kernel = functools.partial(lsq_linear_kernel,
                               x_qmin=float(x_qmin), x_qmax=float(x_qmax),
                               acc_dtype=acc_dtype)

    out = pl.pallas_call(
        kernel,
        out_shape=jax.ShapeDtypeStruct((Mp, Np), jnp.float32),
        grid=(Mp // tm_eff, nj),
        in_specs=[
            pl.BlockSpec(memory_space=pltpu.MemorySpace.SMEM),   # 1/sx
            pl.BlockSpec(memory_space=pltpu.MemorySpace.SMEM),   # sx*sw
            pl.BlockSpec((tm_eff, K), lambda i, j: (i, 0)),      # x row tile (revisited over j)
            w_spec,                                              # weight levels
            b_spec,                                              # bias
        ],
        out_specs=pl.BlockSpec((tm_eff, tn_eff), lambda i, j: (i, j)),
        scratch_shapes=[pltpu.VMEM((tm_eff, K), level_dtype)],   # cached qx levels
        compiler_params=pltpu.CompilerParams(
            # j (N tiles) must run in-order on one core: the qx cache is written
            # at j == 0.  M tiles are independent -> megacore / v7x 2-TC sharding.
            dimension_semantics=("parallel", "arbitrary"),
            vmem_limit_bytes=vmem_limit,
        ),
        cost_estimate=pl.CostEstimate(
            flops=2 * M * K * params.n_out,
            transcendentals=0,
            bytes_accessed=(M * K * x_bytes + Kp * Np * lvl_bytes
                            + Np * 4 + M * Np * 4),
        ),
    )(inv_sx, sxsw, x2d, wq_t, b2d)

    out = out[:M, :params.n_out]
    return out.reshape(*lead, params.n_out)


# ----------------------------- calibration (glue) ----------------------------

def calibrate_symmetric(t, nbits=8):
    """Per-tensor symmetric max-abs calibration (zero_point=None)."""
    qmax = 2 ** (nbits - 1) - 1
    qmin = -(2 ** (nbits - 1))
    scale = jnp.maximum(jnp.max(jnp.abs(t)), 1e-8) / qmax
    return scale.astype(jnp.float32), qmin, qmax


# ----------------------------- main ------------------------------------------

if __name__ == "__main__":
    key = jax.random.PRNGKey(0)
    k_w, k_b, k_cal, k_x = jax.random.split(key, 4)

    # module config (matches nn.Linear(32, 64) with bias; batch=2, seq=8)
    B, S, in_features, out_features = 2, 8, 32, 64
    nbits_w, nbits_a = 8, 8

    bound = 1.0 / math.sqrt(in_features)
    weight = jax.random.uniform(k_w, (out_features, in_features), jnp.float32,
                                minval=-bound, maxval=bound)
    bias = jax.random.uniform(k_b, (out_features,), jnp.float32,
                              minval=-bound, maxval=bound)
    data_batch = jax.random.normal(k_cal, (B, S, in_features), jnp.float32)
    x = jax.random.normal(k_x, (B, S, in_features), jnp.float32)

    # offline LSQ calibration (scales are the learnable LSQ step sizes)
    w_scale, w_qmin, w_qmax = calibrate_symmetric(weight, nbits_w)
    x_scale, x_qmin, x_qmax = calibrate_symmetric(data_batch, nbits_a)

    # one-time weight-side preparation (hoisted out of the per-call forward)
    params = prepare_lsq_linear(weight, bias, w_scale,
                                w_qmin=w_qmin, w_qmax=w_qmax)

    out = lsq_linear(x, params, x_scale, x_qmin=x_qmin, x_qmax=x_qmax)
    out = jax.block_until_ready(out)

    # self-check against a plain JAX reference with the same LSQ semantics.
    # (x uses the same reciprocal-multiply formulation as the kernel; identical
    #  to v/s except for rounding direction on exact representational ties.)
    inv_sx = 1.0 / x_scale
    xq = jnp.clip(jnp.round(x * inv_sx), x_qmin, x_qmax) * x_scale
    wq = jnp.clip(jnp.round(weight / w_scale), w_qmin, w_qmax) * w_scale
    ref = xq @ wq.T + bias
    assert out.shape == ref.shape == (B, S, out_features)
    err = float(jnp.max(jnp.abs(out - ref)))
    assert err < 1e-3, err

    print("KERNEL_OK")
</pallas_src>

<mosaic_0001>
module attributes {stable_mosaic.version = 11 : i64} {
  func.func @lsq_linear_kernel(%arg0: i32, %arg1: i32, %arg2: memref<1xf32, #tpu.memory_space<smem>>, %arg3: memref<1xf32, #tpu.memory_space<smem>>, %arg4: memref<16x32xf32, #tpu.memory_space<vmem>>, %arg5: memref<32x128xbf16, #tpu.memory_space<vmem>>, %arg6: memref<1x128xf32, #tpu.memory_space<vmem>>, %arg7: memref<16x128xf32, #tpu.memory_space<vmem>>, %arg8: memref<16x32xbf16, #tpu.memory_space<vmem>>) attributes {dimension_semantics = [#tpu.dimension_semantics<parallel>, #tpu.dimension_semantics<arbitrary>], iteration_bounds = array<i64: 1, 1>, scalar_prefetch = 0 : i64, scratch_operands = 1 : i64, tpu.core_type = #tpu.core_type<tc>, window_params = [{transform_indices = @transform_0, window_bounds = array<i64: 1>}, {transform_indices = @transform_1, window_bounds = array<i64: 1>}, {transform_indices = @transform_2, window_bounds = array<i64: 16, 32>}, {pipeline_mode = #tpu.pipeline_mode<synchronous>, transform_indices = @transform_3, window_bounds = array<i64: 32, 128>}, {pipeline_mode = #tpu.pipeline_mode<synchronous>, transform_indices = @transform_4, window_bounds = array<i64: 1, 128>}, {transform_indices = @transform_5, window_bounds = array<i64: 16, 128>}]} {
    %c0_i32 = arith.constant 0 : i32
    %0 = arith.cmpi eq, %arg1, %c0_i32 : i32
    %1 = arith.extui %0 : i1 to i32
    %c0_i32_0 = arith.constant 0 : i32
    %2 = arith.cmpi ne, %1, %c0_i32_0 : i32
    scf.if %2 {
      %c0_9 = arith.constant 0 : index
      %c0_10 = arith.constant 0 : index
      %13 = vector.load %arg4[%c0_9, %c0_10] : memref<16x32xf32, #tpu.memory_space<vmem>>, vector<16x32xf32>
      %c0_11 = arith.constant 0 : index
      %14 = memref.load %arg2[%c0_11] : memref<1xf32, #tpu.memory_space<smem>>
      %15 = vector.broadcast %14 : f32 to vector<16x32xf32>
      %16 = arith.mulf %13, %15 : vector<16x32xf32>
      %17 = math.roundeven %16 : vector<16x32xf32>
      %cst_12 = arith.constant -1.280000e+02 : f32
      %cst_13 = arith.constant 1.270000e+02 : f32
      %18 = vector.broadcast %cst_12 : f32 to vector<16x32xf32>
      %19 = arith.maximumf %18, %17 : vector<16x32xf32>
      %20 = vector.broadcast %cst_13 : f32 to vector<16x32xf32>
      %21 = arith.minimumf %20, %19 : vector<16x32xf32>
      %22 = arith.truncf %21 : vector<16x32xf32> to vector<16x32xbf16>
      %c0_14 = arith.constant 0 : index
      %c0_15 = arith.constant 0 : index
      %23 = vector.load %arg8[%c0_14, %c0_15] : memref<16x32xbf16, #tpu.memory_space<vmem>>, vector<16x32xbf16>
      tpu.vector_store %arg8[%c0_14, %c0_15], %22 {strides = array<i32>} : memref<16x32xbf16, #tpu.memory_space<vmem>>, vector<16x32xbf16>,
    } else {
    }
    %c0 = arith.constant 0 : index
    %c0_1 = arith.constant 0 : index
    %3 = vector.load %arg8[%c0, %c0_1] : memref<16x32xbf16, #tpu.memory_space<vmem>>, vector<16x32xbf16>
    %c0_2 = arith.constant 0 : index
    %c0_3 = arith.constant 0 : index
    %4 = vector.load %arg5[%c0_2, %c0_3] : memref<32x128xbf16, #tpu.memory_space<vmem>>, vector<32x128xbf16>
    %cst = arith.constant dense<0.000000e+00> : vector<16x128xf32>
    %5 = tpu.matmul %3, %4, %cst {dimension_numbers = #tpu.dot_dimension_numbers<[1], [0], [0], [1], [0, 0, 1, 1], [], []>} : vector<16x32xbf16>, vector<32x128xbf16>, vector<16x128xf32> -> vector<16x128xf32>
    %c0_4 = arith.constant 0 : index
    %6 = memref.load %arg3[%c0_4] : memref<1xf32, #tpu.memory_space<smem>>
    %7 = vector.broadcast %6 : f32 to vector<16x128xf32>
    %8 = arith.mulf %5, %7 : vector<16x128xf32>
    %c0_5 = arith.constant 0 : index
    %c0_6 = arith.constant 0 : index
    %9 = vector.load %arg6[%c0_5, %c0_6] : memref<1x128xf32, #tpu.memory_space<vmem>>, vector<1x128xf32>
    %10 = vector.broadcast %9 : vector<1x128xf32> to vector<16x128xf32>
    %11 = arith.addf %8, %10 : vector<16x128xf32>
    %c0_7 = arith.constant 0 : index
    %c0_8 = arith.constant 0 : index
    %12 = vector.load %arg7[%c0_7, %c0_8] : memref<16x128xf32, #tpu.memory_space<vmem>>, vector<16x128xf32>
    tpu.vector_store %arg7[%c0_7, %c0_8], %11 {strides = array<i32>} : memref<16x128xf32, #tpu.memory_space<vmem>>, vector<16x128xf32>,
    return
  }
  func.func @transform_0(%arg0: i32, %arg1: i32) -> i32 {
    %c0_i32 = arith.constant 0 : i32
    %c0_i32_0 = arith.constant 0 : i32
    return %c0_i32 : i32
  }
  func.func @transform_1(%arg0: i32, %arg1: i32) -> i32 {
    %c0_i32 = arith.constant 0 : i32
    %c0_i32_0 = arith.constant 0 : i32
    return %c0_i32 : i32
  }
  func.func @transform_2(%arg0: i32, %arg1: i32) -> (i32, i32) {
    %c0_i32 = arith.constant 0 : i32
    %c0_i32_0 = arith.constant 0 : i32
    return %arg0, %c0_i32 : i32, i32
  }
  func.func @transform_3(%arg0: i32, %arg1: i32) -> (i32, i32) {
    %c0_i32 = arith.constant 0 : i32
    %c0_i32_0 = arith.constant 0 : i32
    return %c0_i32, %arg1 : i32, i32
  }
  func.func @transform_4(%arg0: i32, %arg1: i32) -> (i32, i32) {
    %c0_i32 = arith.constant 0 : i32
    %c0_i32_0 = arith.constant 0 : i32
    return %c0_i32, %arg1 : i32, i32
  }
  func.func @transform_5(%arg0: i32, %arg1: i32) -> (i32, i32) {
    %c0_i32 = arith.constant 0 : i32
    return %arg0, %arg1 : i32, i32
  }
}

</mosaic_0001>

<llo_original>
// kernel: tpu_custom_call.1
$region0: #{tpu_custom_call.1}
  #allocation0 [shape = 'u32[]', space=smem, size = 0x4, offset = 0x4, fixed_abs, tag = 'smem constant byte address 0x4 - core index']
  #allocation1 [shape = 'u32[72,128]{1,0:T(1,128)}', space=vmem, size = 0x9000, scoped, tag = 'internal scratch']
  #allocation2 [shape = 'bf16[16,32]{1,0:T(8,128)(2,1)}', space=vmem, size = 0x1000, scoped, tag = 'scratch operand']
  #allocation3 [shape = 'f32[1]{0:T(128)S(6)}', space=smem, size = 0x200, scoped, tag = 'scoped memory for tpu_custom_call.1']
  #allocation4 [shape = 'f32[1]{0:T(128)S(6)}', space=smem, size = 0x200, scoped, tag = 'scoped memory for tpu_custom_call.1']
  %s0 = inlined_call_operand.<no memory space> [shape: f32[1], index: 0, kind: input, shape index: {}]
  %s1 = inlined_call_operand.<no memory space> [shape: f32[1], index: 1, kind: input, shape index: {}]
  %s2 = inlined_call_operand.hbm [shape: f32[16,32], index: 2, kind: input, shape index: {}]
  %s3 = inlined_call_operand.hbm [shape: bf16[32,128], index: 3, kind: input, shape index: {}]
  %s4 = inlined_call_operand.vmem [shape: f32[1,128], index: 4, kind: input, shape index: {}]
  %s5 = inlined_call_operand.hbm [shape: f32[16,128], index: 5, kind: output, shape index: {}]
  %s6 = sld [smem:[#allocation0]]
  $region42: #{tpu_custom_call.1} parent=0
    _
  %s8 = ssub.s32 1, %s6
  %s9 = scalar_select 0, %s8, %s6
  %10 = sst [smem:[#allocation3]] %s0
  %11 = sst [smem:[#allocation4]] %s1
  $region1: #{tpu_custom_call.1} parent=0
    #allocation5 [shape = 'u8[8192]{0}', space=vmem, size = 0x2000, scoped, tag = 'input window, operand 2, single buffered']
    #allocation6 [shape = 's32[1]{0}', space=sflag, size = 0x4, scoped, tag = 'scoped memory for tpu_custom_call.1']
    #allocation7 [shape = 's32[1]{0}', space=sflag, size = 0x4, scoped, tag = 'scoped memory for tpu_custom_call.1']
    #allocation8 [shape = 'u8[8192]{0}', space=vmem, size = 0x2000, scoped, tag = 'input window, operand 3, single buffered']
    #allocation9 [shape = 's32[1]{0}', space=sflag, size = 0x4, scoped, tag = 'scoped memory for tpu_custom_call.1']
    #allocation10 [shape = 'u8[8192]{0}', space=vmem, size = 0x2000, scoped, tag = 'output window, operand 0, single buffered']
    %12 = vsyncpa [#allocation6], 0
    %13 = vsyncpa [#allocation9], 0
    %14 = vsyncpa [#allocation7], 0
    // Predicated region
    $region2: #{tpu_custom_call.1} parent=1 // pred_check
      _
    $region3: #{tpu_custom_call.1} parent=1 // pred_check_branch
      %16 = sbr.rel (0) target = $region5
    $region4: #{tpu_custom_call.1} parent=1 // pred_region
      _
    $region5: #{tpu_custom_call.1} parent=1 // pred_fallthru
      _
    // Predicated region
    $region6: #{tpu_custom_call.1} parent=1 // pred_check
      _
    $region7: #{tpu_custom_call.1} parent=1 // pred_check_branch
      %18 = sbr.rel (0) target = $region9
    $region8: #{tpu_custom_call.1} parent=1 // pred_region
      _
    $region9: #{tpu_custom_call.1} parent=1 // pred_fallthru
      _
    // Predicated region
    $region10: #{tpu_custom_call.1} parent=1 // pred_check
      _
    $region11: #{tpu_custom_call.1} parent=1 // pred_check_branch
      %20 = sbr.rel (0) target = $region13
    $region12: #{tpu_custom_call.1} parent=1 // pred_region
      %22 = vsyncadd [#allocation6], 0
      %s23 = sshll.u32 %s2, 4
      %s24 = int_to_ptr.hbm [resolvable:$true] %s23
      %s25 = sshll.u32 [#allocation5], 4
      %s26 = int_to_ptr.vmem [resolvable:$true] %s25
      %31 = dma.hbm_to_vmem [thread:$0]  %s24, 256, %s26, [#allocation6], 128, 128, 8
    $region13: #{tpu_custom_call.1} parent=1 // pred_fallthru
      _
    // Predicated region
    $region14: #{tpu_custom_call.1} parent=1 // pred_check
      _
    $region15: #{tpu_custom_call.1} parent=1 // pred_check_branch
      %33 = sbr.rel (0) target = $region17
    $region16: #{tpu_custom_call.1} parent=1 // pred_region
      %35 = vsyncadd [#allocation9], 0
      %s36 = sshll.u32 %s3, 4
      %s37 = int_to_ptr.hbm [resolvable:$true] %s36
      %s38 = sshll.u32 [#allocation8], 4
      %s39 = int_to_ptr.vmem [resolvable:$true] %s38
      %44 = dma.hbm_to_vmem [thread:$0]  %s37, 256, %s39, [#allocation9], 64, 64, 4
    $region17: #{tpu_custom_call.1} parent=1 // pred_fallthru
      _
    // Predicated region
    $region18: #{tpu_custom_call.1} parent=1 // pred_check
      _
    $region19: #{tpu_custom_call.1} parent=1 // pred_check_branch
      %46 = sbr.rel (0) target = $region21
    $region20: #{tpu_custom_call.1} parent=1 // pred_region
      _
    $region21: #{tpu_custom_call.1} parent=1 // pred_fallthru
      _
    // Predicated region
    $region22: #{tpu_custom_call.1} parent=1 // pred_check
      _
    $region23: #{tpu_custom_call.1} parent=1 // pred_check_branch
      %48 = sbr.rel (0) target = $region25
    $region24: #{tpu_custom_call.1} parent=1 // pred_region
      %50 = dma.done [#allocation6], 256
    $region25: #{tpu_custom_call.1} parent=1 // pred_fallthru
      _
    // Predicated region
    $region26: #{tpu_custom_call.1} parent=1 // pred_check
      _
    $region27: #{tpu_custom_call.1} parent=1 // pred_check_branch
      %52 = sbr.rel (0) target = $region29
    $region28: #{tpu_custom_call.1} parent=1 // pred_region
      %54 = dma.done [#allocation9], 256
    $region29: #{tpu_custom_call.1} parent=1 // pred_fallthru
      _
    %p56 = scmp.eq.s32.totalorder 0, 0
    // Predicated region
    $region30: #{tpu_custom_call.1} parent=1 // pred_check
      %p57 = pneg %p56
    $region31: #{tpu_custom_call.1} parent=1 // pred_check_branch
      %59 = sbr.rel (%p57) target = $region33
    $region32: #{tpu_custom_call.1} parent=1 // pred_region
      %v60 = vld [vmem:[#allocation5] sm:$0xff]
      %v61 = vld [vmem:[#allocation5 + $0x8] sm:$0xff]
      %s62 = sld [smem:[#allocation3]]
      %v63 = vstv %s62
      %v64 = vmul.f32 %v60, %v63
      %v65 = vmul.f32 %v61, %v63
      %v66 = vround.ne.pseudo %v64
      %v67 = vround.ne.pseudo %v65
      %v68 = vmax.f32 %v66, -128.0
      %v69 = vmax.f32 %v67, -128.0
      %v70 = vmin.f32 %v68, 127.0
      %v71 = vmin.f32 %v69, 127.0
      %v72 = vpack.c.bf16 %v70, %v70
      %v73 = vpack.c.bf16 %v71, %v71
      %vm74 = vcmask 257024
      %75 = vst.msk [vmem:[#allocation2] sm:$0xf] %vm74, %v72
      %76 = vst.msk [vmem:[#allocation2 + $0x4] sm:$0xf] %vm74, %v73
    $region33: #{tpu_custom_call.1} parent=1 // pred_fallthru
      _
    %v77 = vld [vmem:[#allocation2] sm:$0xf]
    %v78 = vld [vmem:[#allocation2 + $0x4] sm:$0xf]
    %v79 = vld [vmem:[#allocation8] sm:$0xf]
    %v80 = vld [vmem:[#allocation8 + $0x4] sm:$0xf]
    %v81 = vld [vmem:[#allocation8 + $0x8] sm:$0xf]
    %v82 = vld [vmem:[#allocation8 + $0xc] sm:$0xf]
    %v85 = vunpack.c.l.b16 %v77
    %v86 = vunpack.c.l.b16 %v78
    %v87 = vpack.c.b16 %v86, %v85
    %v92 = vunpack.c.l.b16 %v79
    %v93 = vunpack.c.l.b16 %v80
    %v94 = vunpack.c.l.b16 %v81
    %v95 = vunpack.c.l.b16 %v82
    %v96 = vpack.c.b16 %v93, %v92
    %v97 = vpack.c.b16 %v95, %v94
    %vm100 = vcmask 261120
    %v102 = vsel %vm100, %v87, 0
    %104 = vmatpush.bf16.msra.mxu0 0
    %105 = vmatpush.bf16.msra.mxu0 0
    %106 = vmatpush.bf16.msra.mxu0 0
    %107 = vmatpush.bf16.msra.mxu0 0
    %108 = vmatpush.bf16.msra.mxu0 0
    %109 = vmatpush.bf16.msra.mxu0 0
    %110 = vmatpush.bf16.msra.mxu0 %v97
    %111 = vmatpush.bf16.msra.mxu0 %v96
    %112 = vmatmul.bf16.gmra.mxu0 %v102
    %v113 = vpop.f32.mrf.mxu0
    %v114 = vadd.f32 0.0, %v113
    %v115 = vpop.f32.mrf.mxu0
    %v116 = vadd.f32 0.0, %v115
    %117 = vdwg.mxu0
    %s118 = sld [smem:[#allocation4]]
    %v119 = vstv %s118
    %v120 = vmul.f32 %v114, %v119
    %v121 = vmul.f32 %v116, %v119
    %v122 = vld [vmem:[%s4] sm:$0x1]
    %v124 = vperm.slane %v122, 0
    %v126 = vadd.f32 %v120, %v124
    %v127 = vadd.f32 %v121, %v124
    %128 = vst [vmem:[#allocation10] sm:$0xff] %v126
    %129 = vst [vmem:[#allocation10 + $0x8] sm:$0xff] %v127
    // Predicated region
    $region34: #{tpu_custom_call.1} parent=1 // pred_check
      _
    $region35: #{tpu_custom_call.1} parent=1 // pred_check_branch
      %131 = sbr.rel (0) target = $region37
    $region36: #{tpu_custom_call.1} parent=1 // pred_region
      %133 = vsyncadd [#allocation7], 0
      %s134 = sshll.u32 [#allocation10], 4
      %s135 = int_to_ptr.vmem [resolvable:$true] %s134
      %s136 = sshll.u32 %s5, 4
      %s137 = int_to_ptr.hbm [resolvable:$true] %s136
      %142 = dma.vmem_to_hbm [thread:$0]  %s135, 256, %s137, [#allocation7], 128, 128, 8
    $region37: #{tpu_custom_call.1} parent=1 // pred_fallthru
      _
    // Predicated region
    $region38: #{tpu_custom_call.1} parent=1 // pred_check
      _
    $region39: #{tpu_custom_call.1} parent=1 // pred_check_branch
      %144 = sbr.rel (0) target = $region41
    $region40: #{tpu_custom_call.1} parent=1 // pred_region
      %146 = dma.done [#allocation7], 256
    $region41: #{tpu_custom_call.1} parent=1 // pred_fallthru
      _
    %147 = vsyncpa [#allocation6], 1
    %148 = vsyncpa [#allocation9], 1
    %149 = vsyncpa [#allocation7], 1

</llo_original>
